<compile_context>
chip_gen: v7x
topology: tpu7x:2x2x1
jax: 0.10.0
libtpu: 0.0.40
codegen_flags: <defaults>
</compile_context>

<pallas_src>
import functools

import jax
import jax.numpy as jnp
from jax.experimental import pallas as pl
from jax.experimental.pallas import tpu as pltpu


def _round_up(n, m):
    return ((n + m - 1) // m) * m


def _cdiv(a, b):
    return -(-a // b)


def _pick_tiling(B):
    """Pick (B_pad, TB): tiles are multiples of 16 rows (bf16 packs 2 rows/sublane),
    capped at 2048 rows, and the grid is even (>= 2) whenever the batch is big
    enough so v7x's two TensorCores both get tiles."""
    Bp = _round_up(B, 16)
    if Bp <= 32:
        return Bp, Bp                      # tiny batch: a single small tile
    n_tiles = max(2, _cdiv(Bp, 2048))
    if n_tiles % 2:
        n_tiles += 1
    TB = _round_up(_cdiv(Bp, n_tiles), 16)
    return TB * n_tiles, TB


def _basic_classifier_kernel(x_ref, w13_ref, w4_ref, w2_ref,
                             b13_ref, b4_ref, b2_ref, o_ref):
    x = x_ref[...]                                                   # [TB, C] bf16
    # stage 1 (cl1 | cl3 fused): [x1 | x21] = relu(x @ [w1|w3] + [b1|b3])
    h1 = jnp.dot(x, w13_ref[...], preferred_element_type=jnp.float32)
    h1 = jnp.maximum(h1 + b13_ref[...], 0.0).astype(x.dtype)
    # stage 2 (cl4 + x1 pass-through): [x22 | x1] = relu(h1 @ [[0,I],[w4,0]] + [b4|0])
    # x1 >= 0 so the identity-routed columns survive this ReLU unchanged.
    h2 = jnp.dot(h1, w4_ref[...], preferred_element_type=jnp.float32)
    h2 = jnp.maximum(h2 + b4_ref[...], 0.0).astype(x.dtype)
    # stage 3 (cl2, residual add folded): out = [x22|x1] @ [[w2],[w2]] + b2
    out = jnp.dot(h2, w2_ref[...], preferred_element_type=jnp.float32)
    o_ref[...] = (out + b2_ref[...]).astype(o_ref.dtype)


def pack_params(params, in_channel, out_channel, compute_dtype=jnp.bfloat16):
    """Fuse the four Linear layers into three small bf16 weights + three f32 bias rows.

    Column layouts of the intermediate activations:
      h1 : [x1 (0:h) | x21 (h:h+16)]
      h2 : [x22 (0:h) | x1 (h:2h)]
    """
    (w1, b1), (w2, b2), (w3, b3), (w4, b4) = params
    h = in_channel // 2

    # stage 1: x @ [w1 | w3]                                  (C, h+16)
    w13 = jnp.concatenate([w1, w3], axis=1).astype(compute_dtype)
    b13 = jnp.concatenate([b1, b3], axis=1).astype(jnp.float32)          # (1, h+16)

    # stage 2: [x1|x21] @ [[0, I],[w4, 0]] -> [x22_pre | x1]  (h+16, 2h)
    w4p = jnp.zeros((h + 16, 2 * h), jnp.float32)
    w4p = w4p.at[h:h + 16, 0:h].set(w4)
    w4p = w4p.at[0:h, h:2 * h].set(jnp.eye(h, dtype=jnp.float32))
    w4p = w4p.astype(compute_dtype)
    b4p = jnp.concatenate([b4, jnp.zeros((1, h), jnp.float32)], axis=1)  # (1, 2h)

    # stage 3: [x22 | x1] @ [[w2],[w2]] (residual add folded)  (2h, out)
    w2p = jnp.concatenate([w2, w2], axis=0).astype(compute_dtype)
    b2p = b2.astype(jnp.float32)                                         # (1, out)

    return (w13, w4p, w2p, b13, b4p.astype(jnp.float32), b2p)


@jax.jit
def basic_classifier_forward(x, packed):
    """Residual forward of BasicClassifier: three fused matmuls in one kernel."""
    w13, w4p, w2p, b13, b4p, b2p = packed
    B, C = x.shape
    out_channel = w2p.shape[1]
    B_pad, TB = _pick_tiling(B)

    # Single fused cast(+pad) to bf16 — no f32 padded intermediate in HBM.
    xp = x.astype(w13.dtype)
    if B_pad != B:
        xp = jnp.pad(xp, ((0, B_pad - B), (0, 0)))

    out = pl.pallas_call(
        _basic_classifier_kernel,
        out_shape=jax.ShapeDtypeStruct((B_pad, out_channel), jnp.float32),
        grid=(B_pad // TB,),
        in_specs=[
            pl.BlockSpec((TB, C), lambda i: (i, 0)),            # x streams over batch
            pl.BlockSpec(w13.shape, lambda i: (0, 0)),          # weights/biases stay
            pl.BlockSpec(w4p.shape, lambda i: (0, 0)),          #   VMEM-resident
            pl.BlockSpec(w2p.shape, lambda i: (0, 0)),
            pl.BlockSpec(b13.shape, lambda i: (0, 0)),
            pl.BlockSpec(b4p.shape, lambda i: (0, 0)),
            pl.BlockSpec(b2p.shape, lambda i: (0, 0)),
        ],
        out_specs=pl.BlockSpec((TB, out_channel), lambda i: (i, 0)),
        compiler_params=pltpu.CompilerParams(
            dimension_semantics=("parallel",),   # split batch tiles across v7x's 2 TCs
        ),
    )(xp, w13, w4p, w2p, b13, b4p, b2p)

    return out if B_pad == B else out[:B]


def init_linear(key, fan_in, fan_out):
    """Deterministic init mimicking torch.nn.Linear default (uniform +/- 1/sqrt(fan_in)).
    Weight already transposed to (fan_in, fan_out); bias as (1, fan_out)."""
    kw, kb = jax.random.split(key)
    bound = 1.0 / jnp.sqrt(fan_in)
    w = jax.random.uniform(kw, (fan_in, fan_out), jnp.float32, -bound, bound)
    b = jax.random.uniform(kb, (1, fan_out), jnp.float32, -bound, bound)
    return w, b


def reference_forward(x, params):
    (w1, b1), (w2, b2), (w3, b3), (w4, b4) = params
    x1 = jnp.maximum(x @ w1 + b1, 0.0)
    x21 = jnp.maximum(x @ w3 + b3, 0.0)
    x22 = jnp.maximum(x21 @ w4 + b4, 0.0)
    return (x1 + x22) @ w2 + b2


if __name__ == "__main__":
    in_channel = 32
    out_channel = 8
    batch = 8

    key = jax.random.PRNGKey(0)
    kx, k1, k2, k3, k4 = jax.random.split(key, 5)

    x = jax.random.normal(kx, (batch, in_channel), jnp.float32)

    params = (
        init_linear(k1, in_channel, in_channel // 2),   # cl1
        init_linear(k2, in_channel // 2, out_channel),  # cl2
        init_linear(k3, in_channel, 16),                # cl3
        init_linear(k4, 16, in_channel // 2),           # cl4
    )
    # TODO(synk): forward_normal (residual=False) branch and the unused cl5 layer are
    # not implemented; residual=True is the module default and the only path exercised.

    packed = pack_params(params, in_channel, out_channel)

    out = basic_classifier_forward(x, packed)
    jax.block_until_ready(out)

    ref = reference_forward(x, params)
    assert out.shape == (batch, out_channel)
    # bf16 MXU operands with f32 accumulation + f32 bias adds -> small bounded error.
    assert jnp.allclose(out, ref, atol=5e-2, rtol=5e-2), float(jnp.max(jnp.abs(out - ref)))

    print("KERNEL_OK")
</pallas_src>

<mosaic_0001>
module attributes {stable_mosaic.version = 11 : i64} {
  func.func @_basic_classifier_kernel(%arg0: i32, %arg1: memref<16x32xbf16, #tpu.memory_space<vmem>>, %arg2: memref<32x32xbf16, #tpu.memory_space<vmem>>, %arg3: memref<32x32xbf16, #tpu.memory_space<vmem>>, %arg4: memref<32x8xbf16, #tpu.memory_space<vmem>>, %arg5: memref<1x32xf32, #tpu.memory_space<vmem>>, %arg6: memref<1x32xf32, #tpu.memory_space<vmem>>, %arg7: memref<1x8xf32, #tpu.memory_space<vmem>>, %arg8: memref<16x8xf32, #tpu.memory_space<vmem>>) attributes {dimension_semantics = [#tpu.dimension_semantics<parallel>], iteration_bounds = array<i64: 1>, scalar_prefetch = 0 : i64, scratch_operands = 0 : i64, tpu.core_type = #tpu.core_type<tc>, window_params = [{transform_indices = @transform_0, window_bounds = array<i64: 16, 32>}, {pipeline_mode = #tpu.pipeline_mode<synchronous>, transform_indices = @transform_1, window_bounds = array<i64: 32, 32>}, {pipeline_mode = #tpu.pipeline_mode<synchronous>, transform_indices = @transform_2, window_bounds = array<i64: 32, 32>}, {pipeline_mode = #tpu.pipeline_mode<synchronous>, transform_indices = @transform_3, window_bounds = array<i64: 32, 8>}, {pipeline_mode = #tpu.pipeline_mode<synchronous>, transform_indices = @transform_4, window_bounds = array<i64: 1, 32>}, {pipeline_mode = #tpu.pipeline_mode<synchronous>, transform_indices = @transform_5, window_bounds = array<i64: 1, 32>}, {pipeline_mode = #tpu.pipeline_mode<synchronous>, transform_indices = @transform_6, window_bounds = array<i64: 1, 8>}, {transform_indices = @transform_7, window_bounds = array<i64: 16, 8>}]} {
    %c0 = arith.constant 0 : index
    %c0_0 = arith.constant 0 : index
    %0 = vector.load %arg1[%c0, %c0_0] : memref<16x32xbf16, #tpu.memory_space<vmem>>, vector<16x32xbf16>
    %c0_1 = arith.constant 0 : index
    %c0_2 = arith.constant 0 : index
    %1 = vector.load %arg2[%c0_1, %c0_2] : memref<32x32xbf16, #tpu.memory_space<vmem>>, vector<32x32xbf16>
    %cst = arith.constant dense<0.000000e+00> : vector<16x32xf32>
    %2 = tpu.matmul %0, %1, %cst {dimension_numbers = #tpu.dot_dimension_numbers<[1], [0], [0], [1], [0, 0, 1, 1], [], []>} : vector<16x32xbf16>, vector<32x32xbf16>, vector<16x32xf32> -> vector<16x32xf32>
    %c0_3 = arith.constant 0 : index
    %c0_4 = arith.constant 0 : index
    %3 = vector.load %arg5[%c0_3, %c0_4] : memref<1x32xf32, #tpu.memory_space<vmem>>, vector<1x32xf32>
    %4 = vector.broadcast %3 : vector<1x32xf32> to vector<16x32xf32>
    %5 = arith.addf %2, %4 : vector<16x32xf32>
    %cst_5 = arith.constant 0.000000e+00 : f32
    %6 = vector.broadcast %cst_5 : f32 to vector<16x32xf32>
    %7 = arith.maximumf %5, %6 : vector<16x32xf32>
    %8 = arith.truncf %7 : vector<16x32xf32> to vector<16x32xbf16>
    %c0_6 = arith.constant 0 : index
    %c0_7 = arith.constant 0 : index
    %9 = vector.load %arg3[%c0_6, %c0_7] : memref<32x32xbf16, #tpu.memory_space<vmem>>, vector<32x32xbf16>
    %cst_8 = arith.constant dense<0.000000e+00> : vector<16x32xf32>
    %10 = tpu.matmul %8, %9, %cst_8 {dimension_numbers = #tpu.dot_dimension_numbers<[1], [0], [0], [1], [0, 0, 1, 1], [], []>} : vector<16x32xbf16>, vector<32x32xbf16>, vector<16x32xf32> -> vector<16x32xf32>
    %c0_9 = arith.constant 0 : index
    %c0_10 = arith.constant 0 : index
    %11 = vector.load %arg6[%c0_9, %c0_10] : memref<1x32xf32, #tpu.memory_space<vmem>>, vector<1x32xf32>
    %12 = vector.broadcast %11 : vector<1x32xf32> to vector<16x32xf32>
    %13 = arith.addf %10, %12 : vector<16x32xf32>
    %cst_11 = arith.constant 0.000000e+00 : f32
    %14 = vector.broadcast %cst_11 : f32 to vector<16x32xf32>
    %15 = arith.maximumf %13, %14 : vector<16x32xf32>
    %16 = arith.truncf %15 : vector<16x32xf32> to vector<16x32xbf16>
    %c0_12 = arith.constant 0 : index
    %c0_13 = arith.constant 0 : index
    %17 = vector.load %arg4[%c0_12, %c0_13] : memref<32x8xbf16, #tpu.memory_space<vmem>>, vector<32x8xbf16>
    %cst_14 = arith.constant dense<0.000000e+00> : vector<16x8xf32>
    %18 = tpu.matmul %16, %17, %cst_14 {dimension_numbers = #tpu.dot_dimension_numbers<[1], [0], [0], [1], [0, 0, 1, 1], [], []>} : vector<16x32xbf16>, vector<32x8xbf16>, vector<16x8xf32> -> vector<16x8xf32>
    %c0_15 = arith.constant 0 : index
    %c0_16 = arith.constant 0 : index
    %19 = vector.load %arg7[%c0_15, %c0_16] : memref<1x8xf32, #tpu.memory_space<vmem>>, vector<1x8xf32>
    %20 = vector.broadcast %19 : vector<1x8xf32> to vector<16x8xf32>
    %21 = arith.addf %18, %20 : vector<16x8xf32>
    %c0_17 = arith.constant 0 : index
    %c0_18 = arith.constant 0 : index
    %22 = vector.load %arg8[%c0_17, %c0_18] : memref<16x8xf32, #tpu.memory_space<vmem>>, vector<16x8xf32>
    tpu.vector_store %arg8[%c0_17, %c0_18], %21 {strides = array<i32>} : memref<16x8xf32, #tpu.memory_space<vmem>>, vector<16x8xf32>,
    return
  }
  func.func @transform_0(%arg0: i32) -> (i32, i32) {
    %c0_i32 = arith.constant 0 : i32
    %c0_i32_0 = arith.constant 0 : i32
    return %arg0, %c0_i32 : i32, i32
  }
  func.func @transform_1(%arg0: i32) -> (i32, i32) {
    %c0_i32 = arith.constant 0 : i32
    %c0_i32_0 = arith.constant 0 : i32
    %c0_i32_1 = arith.constant 0 : i32
    return %c0_i32, %c0_i32_0 : i32, i32
  }
  func.func @transform_2(%arg0: i32) -> (i32, i32) {
    %c0_i32 = arith.constant 0 : i32
    %c0_i32_0 = arith.constant 0 : i32
    %c0_i32_1 = arith.constant 0 : i32
    return %c0_i32, %c0_i32_0 : i32, i32
  }
  func.func @transform_3(%arg0: i32) -> (i32, i32) {
    %c0_i32 = arith.constant 0 : i32
    %c0_i32_0 = arith.constant 0 : i32
    %c0_i32_1 = arith.constant 0 : i32
    return %c0_i32, %c0_i32_0 : i32, i32
  }
  func.func @transform_4(%arg0: i32) -> (i32, i32) {
    %c0_i32 = arith.constant 0 : i32
    %c0_i32_0 = arith.constant 0 : i32
    %c0_i32_1 = arith.constant 0 : i32
    return %c0_i32, %c0_i32_0 : i32, i32
  }
  func.func @transform_5(%arg0: i32) -> (i32, i32) {
    %c0_i32 = arith.constant 0 : i32
    %c0_i32_0 = arith.constant 0 : i32
    %c0_i32_1 = arith.constant 0 : i32
    return %c0_i32, %c0_i32_0 : i32, i32
  }
  func.func @transform_6(%arg0: i32) -> (i32, i32) {
    %c0_i32 = arith.constant 0 : i32
    %c0_i32_0 = arith.constant 0 : i32
    %c0_i32_1 = arith.constant 0 : i32
    return %c0_i32, %c0_i32_0 : i32, i32
  }
  func.func @transform_7(%arg0: i32) -> (i32, i32) {
    %c0_i32 = arith.constant 0 : i32
    %c0_i32_0 = arith.constant 0 : i32
    return %arg0, %c0_i32 : i32, i32
  }
}

</mosaic_0001>

<llo_original>
// kernel: basic_classifier_forward.1
$region0: #{basic_classifier_forward.1}
  #allocation0 [shape = 'u32[]', space=smem, size = 0x4, offset = 0x4, fixed_abs, tag = 'smem constant byte address 0x4 - core index']
  #allocation1 [shape = 'u32[144,128]{1,0:T(1,128)}', space=vmem, size = 0x12000, scoped, tag = 'internal scratch']
  %s0 = inlined_call_operand.vmem [shape: bf16[16,32], index: 0, kind: input, shape index: {}]
  %s1 = inlined_call_operand.vmem [shape: bf16[32,32], index: 1, kind: input, shape index: {}]
  %s2 = inlined_call_operand.vmem [shape: bf16[32,32], index: 2, kind: input, shape index: {}]
  %s3 = inlined_call_operand.vmem [shape: bf16[32,8], index: 3, kind: input, shape index: {}]
  %s4 = inlined_call_operand.vmem [shape: f32[1,32], index: 4, kind: input, shape index: {}]
  %s5 = inlined_call_operand.vmem [shape: f32[1,32], index: 5, kind: input, shape index: {}]
  %s6 = inlined_call_operand.vmem [shape: f32[1,8], index: 6, kind: input, shape index: {}]
  %s7 = inlined_call_operand.vmem [shape: f32[16,8], index: 7, kind: output, shape index: {}]
  %s8 = sld [smem:[#allocation0]]
  $region38: #{basic_classifier_forward.1} parent=0
    _
  %s10 = ssub.s32 1, %s8
  %s11 = scalar_select 0, %s10, %s8
  // Predicated region
  $region2: #{basic_classifier_forward.1} parent=0 // pred_check
    _
  $region3: #{basic_classifier_forward.1} parent=0 // pred_check_branch
    %13 = sbr.rel (0) target = $region5
  $region4: #{basic_classifier_forward.1} parent=0 // pred_region
    _
  $region5: #{basic_classifier_forward.1} parent=0 // pred_fallthru
    _
  // Predicated region
  $region6: #{basic_classifier_forward.1} parent=0 // pred_check
    _
  $region7: #{basic_classifier_forward.1} parent=0 // pred_check_branch
    %15 = sbr.rel (0) target = $region9
  $region8: #{basic_classifier_forward.1} parent=0 // pred_region
    _
  $region9: #{basic_classifier_forward.1} parent=0 // pred_fallthru
    _
  // Predicated region
  $region10: #{basic_classifier_forward.1} parent=0 // pred_check
    _
  $region11: #{basic_classifier_forward.1} parent=0 // pred_check_branch
    %17 = sbr.rel (0) target = $region13
  $region12: #{basic_classifier_forward.1} parent=0 // pred_region
    _
  $region13: #{basic_classifier_forward.1} parent=0 // pred_fallthru
    _
  // Predicated region
  $region14: #{basic_classifier_forward.1} parent=0 // pred_check
    _
  $region15: #{basic_classifier_forward.1} parent=0 // pred_check_branch
    %19 = sbr.rel (0) target = $region17
  $region16: #{basic_classifier_forward.1} parent=0 // pred_region
    _
  $region17: #{basic_classifier_forward.1} parent=0 // pred_fallthru
    _
  // Predicated region
  $region18: #{basic_classifier_forward.1} parent=0 // pred_check
    _
  $region19: #{basic_classifier_forward.1} parent=0 // pred_check_branch
    %21 = sbr.rel (0) target = $region21
  $region20: #{basic_classifier_forward.1} parent=0 // pred_region
    _
  $region21: #{basic_classifier_forward.1} parent=0 // pred_fallthru
    _
  // Predicated region
  $region22: #{basic_classifier_forward.1} parent=0 // pred_check
    _
  $region23: #{basic_classifier_forward.1} parent=0 // pred_check_branch
    %23 = sbr.rel (0) target = $region25
  $region24: #{basic_classifier_forward.1} parent=0 // pred_region
    _
  $region25: #{basic_classifier_forward.1} parent=0 // pred_fallthru
    _
  // Predicated region
  $region26: #{basic_classifier_forward.1} parent=0 // pred_check
    _
  $region27: #{basic_classifier_forward.1} parent=0 // pred_check_branch
    %25 = sbr.rel (0) target = $region29
  $region28: #{basic_classifier_forward.1} parent=0 // pred_region
    _
  $region29: #{basic_classifier_forward.1} parent=0 // pred_fallthru
    _
  %v27 = vld [vmem:[%s0] sm:$0xf]
  %v28 = vld [vmem:[%s0 + $0x4] sm:$0xf]
  %v29 = vld [vmem:[%s1] sm:$0xf]
  %v30 = vld [vmem:[%s1 + $0x4] sm:$0xf]
  %v31 = vld [vmem:[%s1 + $0x8] sm:$0xf]
  %v32 = vld [vmem:[%s1 + $0xc] sm:$0xf]
  %v33 = vld [vmem:[%s4] sm:$0x1]
  %v35 = vlaneseq
  %v36 = vshrl.u32 %v35, 7
  %v37 = vsub.s32 0, %v36
  %v38 = vrot.slane %v33, %v37
  %v42 = vunpack.c.l.b16 %v27
  %v43 = vunpack.c.l.b16 %v28
  %v44 = vpack.c.b16 %v43, %v42
  %v49 = vunpack.c.l.b16 %v29
  %v50 = vunpack.c.l.b16 %v30
  %v51 = vunpack.c.l.b16 %v31
  %v52 = vunpack.c.l.b16 %v32
  %v53 = vpack.c.b16 %v50, %v49
  %v54 = vpack.c.b16 %v52, %v51
  %vm57 = vcmask 261120
  %v59 = vsel %vm57, %v44, 0
  %61 = vmatprep.subr.bf16.mxu0 0
  %62 = vmatpush1.bf16.msra.mxu0 %v53
  %63 = vmatprep.subr.bf16.mxu0 0
  %64 = vmatpush1.bf16.msra.mxu0 %v54
  %65 = vmatprep.subr.bf16.mxu0 0
  %66 = vmatpush1.bf16.msra.mxu0 0
  %67 = vmatprep.subr.bf16.mxu0 0
  %68 = vmatpush1.bf16.msra.mxu0 0
  %69 = vmatprep.subr.bf16.mxu0 0
  %70 = vmatpush1.bf16.msra.mxu0 0
  %71 = vmatprep.subr.bf16.mxu0 0
  %72 = vmatpush1.bf16.msra.mxu0 0
  %73 = vmatprep.subr.bf16.mxu0 0
  %74 = vmatpush1.bf16.msra.mxu0 0
  %75 = vmatprep.subr.bf16.mxu0 0
  %76 = vmatpush1.bf16.msra.mxu0 0
  %77 = vmatprep.subr.bf16.mxu0 0
  %78 = vmatpush1.bf16.msra.mxu0 0
  %79 = vmatprep.subr.bf16.mxu0 0
  %80 = vmatpush1.bf16.msra.mxu0 0
  %81 = vmatprep.subr.bf16.mxu0 0
  %82 = vmatpush1.bf16.msra.mxu0 0
  %83 = vmatprep.subr.bf16.mxu0 0
  %84 = vmatpush1.bf16.msra.mxu0 0
  %85 = vmatprep.subr.bf16.mxu0 0
  %86 = vmatpush1.bf16.msra.mxu0 0
  %87 = vmatprep.subr.bf16.mxu0 0
  %88 = vmatpush1.bf16.msra.mxu0 0
  %89 = vmatprep.subr.bf16.mxu0 0
  %90 = vmatpush1.bf16.msra.mxu0 0
  %91 = vmatprep.subr.bf16.mxu0 0
  %92 = vmatpush1.bf16.msra.mxu0 0
  %93 = vmatprep.mubr.bf16.mxu0 0
  %94 = vmatmul.mubr.bf16.gmra.mrb[0].mxu0 %v59
  %v95 = vpop.f32.mrb[0].mxu0
  %v96 = vadd.f32 %v38, %v95
  %v97 = vpop.f32.mrb[0].mxu0
  %v98 = vpop.f32.mrb[0].mxu0
  %v99 = vadd.f32 %v38, %v98
  %v100 = vpop.f32.mrb[0].mxu0
  %101 = vdwg.mxu0
  %v102 = vmax.f32 %v96, 0.0
  %v103 = vmax.f32 %v99, 0.0
  %v104 = vpack.c.bf16 %v103, %v102
  %v105 = vld [vmem:[%s2] sm:$0xf]
  %v106 = vld [vmem:[%s2 + $0x4] sm:$0xf]
  %v107 = vld [vmem:[%s2 + $0x8] sm:$0xf]
  %v108 = vld [vmem:[%s2 + $0xc] sm:$0xf]
  %v109 = vld [vmem:[%s5] sm:$0x1]
  %v111 = vlaneseq
  %v112 = vshrl.u32 %v111, 7
  %v113 = vsub.s32 0, %v112
  %v114 = vrot.slane %v109, %v113
  %v120 = vunpack.c.l.b16 %v105
  %v121 = vunpack.c.l.b16 %v106
  %v122 = vunpack.c.l.b16 %v107
  %v123 = vunpack.c.l.b16 %v108
  %v124 = vpack.c.b16 %v121, %v120
  %v125 = vpack.c.b16 %v123, %v122
  %v129 = vsel %vm57, %v104, 0
  %131 = vmatprep.subr.bf16.mxu0 0
  %132 = vmatpush1.bf16.msra.mxu0 %v124
  %133 = vmatprep.subr.bf16.mxu0 0
  %134 = vmatpush1.bf16.msra.mxu0 %v125
  %135 = vmatprep.subr.bf16.mxu0 0
  %136 = vmatpush1.bf16.msra.mxu0 0
  %137 = vmatprep.subr.bf16.mxu0 0
  %138 = vmatpush1.bf16.msra.mxu0 0
  %139 = vmatprep.subr.bf16.mxu0 0
  %140 = vmatpush1.bf16.msra.mxu0 0
  %141 = vmatprep.subr.bf16.mxu0 0
  %142 = vmatpush1.bf16.msra.mxu0 0
  %143 = vmatprep.subr.bf16.mxu0 0
  %144 = vmatpush1.bf16.msra.mxu0 0
  %145 = vmatprep.subr.bf16.mxu0 0
  %146 = vmatpush1.bf16.msra.mxu0 0
  %147 = vmatprep.subr.bf16.mxu0 0
  %148 = vmatpush1.bf16.msra.mxu0 0
  %149 = vmatprep.subr.bf16.mxu0 0
  %150 = vmatpush1.bf16.msra.mxu0 0
  %151 = vmatprep.subr.bf16.mxu0 0
  %152 = vmatpush1.bf16.msra.mxu0 0
  %153 = vmatprep.subr.bf16.mxu0 0
  %154 = vmatpush1.bf16.msra.mxu0 0
  %155 = vmatprep.subr.bf16.mxu0 0
  %156 = vmatpush1.bf16.msra.mxu0 0
  %157 = vmatprep.subr.bf16.mxu0 0
  %158 = vmatpush1.bf16.msra.mxu0 0
  %159 = vmatprep.subr.bf16.mxu0 0
  %160 = vmatpush1.bf16.msra.mxu0 0
  %161 = vmatprep.subr.bf16.mxu0 0
  %162 = vmatpush1.bf16.msra.mxu0 0
  %163 = vmatprep.mubr.bf16.mxu0 0
  %164 = vmatmul.mubr.bf16.gmra.mrb[0].mxu0 %v129
  %v165 = vpop.f32.mrb[0].mxu0
  %v166 = vadd.f32 %v114, %v165
  %v167 = vpop.f32.mrb[0].mxu0
  %v168 = vpop.f32.mrb[0].mxu0
  %v169 = vadd.f32 %v114, %v168
  %v170 = vpop.f32.mrb[0].mxu0
  %171 = vdwg.mxu0
  %v172 = vmax.f32 %v166, 0.0
  %v173 = vmax.f32 %v169, 0.0
  %v174 = vpack.c.bf16 %v173, %v172
  %v175 = vld [vmem:[%s3] sm:$0xf]
  %v176 = vld [vmem:[%s3 + $0x4] sm:$0xf]
  %v177 = vld [vmem:[%s3 + $0x8] sm:$0xf]
  %v178 = vld [vmem:[%s3 + $0xc] sm:$0xf]
  %v179 = vld [vmem:[%s6] sm:$0x1]
  %v181 = vlaneseq
  %v182 = vshrl.u32 %v181, 7
  %v183 = vsub.s32 0, %v182
  %v184 = vrot.slane %v179, %v183
  %v190 = vunpack.c.l.b16 %v175
  %v191 = vunpack.c.l.b16 %v176
  %v192 = vunpack.c.l.b16 %v177
  %v193 = vunpack.c.l.b16 %v178
  %v194 = vpack.c.b16 %v191, %v190
  %v195 = vpack.c.b16 %v193, %v192
  %v199 = vsel %vm57, %v174, 0
  %201 = vmatprep.subr.bf16.mxu0 0
  %202 = vmatpush1.bf16.msra.mxu0 %v194
  %203 = vmatprep.subr.bf16.mxu0 0
  %204 = vmatpush1.bf16.msra.mxu0 %v195
  %205 = vmatprep.subr.bf16.mxu0 0
  %206 = vmatpush1.bf16.msra.mxu0 0
  %207 = vmatprep.subr.bf16.mxu0 0
  %208 = vmatpush1.bf16.msra.mxu0 0
  %209 = vmatprep.subr.bf16.mxu0 0
  %210 = vmatpush1.bf16.msra.mxu0 0
  %211 = vmatprep.subr.bf16.mxu0 0
  %212 = vmatpush1.bf16.msra.mxu0 0
  %213 = vmatprep.subr.bf16.mxu0 0
  %214 = vmatpush1.bf16.msra.mxu0 0
  %215 = vmatprep.subr.bf16.mxu0 0
  %216 = vmatpush1.bf16.msra.mxu0 0
  %217 = vmatprep.subr.bf16.mxu0 0
  %218 = vmatpush1.bf16.msra.mxu0 0
  %219 = vmatprep.subr.bf16.mxu0 0
  %220 = vmatpush1.bf16.msra.mxu0 0
  %221 = vmatprep.subr.bf16.mxu0 0
  %222 = vmatpush1.bf16.msra.mxu0 0
  %223 = vmatprep.subr.bf16.mxu0 0
  %224 = vmatpush1.bf16.msra.mxu0 0
  %225 = vmatprep.subr.bf16.mxu0 0
  %226 = vmatpush1.bf16.msra.mxu0 0
  %227 = vmatprep.subr.bf16.mxu0 0
  %228 = vmatpush1.bf16.msra.mxu0 0
  %229 = vmatprep.subr.bf16.mxu0 0
  %230 = vmatpush1.bf16.msra.mxu0 0
  %231 = vmatprep.subr.bf16.mxu0 0
  %232 = vmatpush1.bf16.msra.mxu0 0
  %233 = vmatprep.mubr.bf16.mxu0 0
  %234 = vmatmul.mubr.bf16.gmra.mrb[0].mxu0 %v199
  %v235 = vpop.f32.mrb[0].mxu0
  %v236 = vadd.f32 %v184, %v235
  %v237 = vpop.f32.mrb[0].mxu0
  %v238 = vpop.f32.mrb[0].mxu0
  %v239 = vadd.f32 %v184, %v238
  %v240 = vpop.f32.mrb[0].mxu0
  %241 = vdwg.mxu0
  %vm242 = vcmask 64512
  %243 = vst.msk [vmem:[%s7] sm:$0xff] %vm242, %v236
  %244 = vst.msk [vmem:[%s7 + $0x8] sm:$0xff] %vm242, %v239
  // Predicated region
  $region30: #{basic_classifier_forward.1} parent=0 // pred_check
    _
  $region31: #{basic_classifier_forward.1} parent=0 // pred_check_branch
    %246 = sbr.rel (0) target = $region33
  $region32: #{basic_classifier_forward.1} parent=0 // pred_region
    _
  $region33: #{basic_classifier_forward.1} parent=0 // pred_fallthru
    _
  // Predicated region
  $region34: #{basic_classifier_forward.1} parent=0 // pred_check
    _
  $region35: #{basic_classifier_forward.1} parent=0 // pred_check_branch
    %248 = sbr.rel (0) target = $region37
  $region36: #{basic_classifier_forward.1} parent=0 // pred_region
    _
  $region37: #{basic_classifier_forward.1} parent=0 // pred_fallthru
    _

</llo_original>
